<compile_context>
chip_gen: v6e
topology: v6e:2x2x1
jax: 0.10.0
libtpu: 0.0.40
codegen_flags: <defaults>
</compile_context>

<pallas_src>
import math

import jax
import jax.numpy as jnp
from jax.experimental import pallas as pl
from jax.experimental.pallas import tpu as pltpu


# ----------------------------------------------------------------------------
# Kernel: pure-bandwidth identity copy of one lane-dense tile.
# ----------------------------------------------------------------------------
def _copy_kernel(x_ref, o_ref):
    o_ref[...] = x_ref[...]


# ----------------------------------------------------------------------------
# Shape resolution (torch.Tensor.view semantics, incl. a single -1).
# ----------------------------------------------------------------------------
def _resolve_shape(total, shape):
    shape = list(shape)
    if -1 in shape:
        idx = shape.index(-1)
        rest = 1
        for i, s in enumerate(shape):
            if i != idx:
                rest *= s
        if rest == 0 or total % rest != 0:
            raise ValueError("view shape incompatible with input size")
        shape[idx] = total // rest
    if math.prod(shape) != total:
        raise ValueError("view shape incompatible with input size")
    return tuple(shape)


# ----------------------------------------------------------------------------
# Tiling plan for the (optional) materializing copy.
# ----------------------------------------------------------------------------
_LANE_CANDIDATES = (16384, 8192, 4096, 2048, 1024, 512, 256, 128)
_MIN_STEPS = 8                      # enough grid steps to pipeline / split TCs
_MIB = 1024 * 1024


def _vmem_budget_bytes():
    """Generation-aware cap on the kernel's resident VMEM."""
    try:
        cap = int(pltpu.get_tpu_info().vmem_capacity_bytes)
    except Exception:
        cap = 64 * _MIB             # conservative default: v7x per-TC VMEM
    if cap >= 96 * _MIB:            # v5e / v6e: 128 MiB physical VMEM
        return 64 * _MIB
    return 48 * _MIB                # v7x: 64 MiB per TensorCore


def _divisors(n):
    divs = set()
    i = 1
    while i * i <= n:
        if n % i == 0:
            divs.add(i)
            divs.add(n // i)
        i += 1
    return sorted(divs)


def _pick_block_rows(rows, min_rows, target_rows):
    """Divisor of `rows`, multiple of the native sublane tile, <= target."""
    cands = [d for d in _divisors(rows) if d % min_rows == 0 and d <= target_rows]
    if not cands:
        return None

    def steps(d):
        return rows // d

    tier0 = [d for d in cands if steps(d) >= _MIN_STEPS and steps(d) % 2 == 0]
    if tier0:
        return max(tier0)           # biggest block that still pipelines evenly
    tier1 = [d for d in cands if steps(d) >= _MIN_STEPS]
    if tier1:
        return max(tier1)
    return min(cands)               # small tensor: maximize step count instead


def _plan(total, itemsize, target_block_bytes):
    """Return (lanes, padded_rows, block_rows); padded_rows*lanes >= total."""
    min_rows = max(8, 32 // itemsize)       # native sublane tile per dtype

    # Preferred: exact lane-dense factorization (no padding traffic).
    lanes = next((l for l in _LANE_CANDIDATES if total % l == 0), None)
    if lanes is not None:
        rows = total // lanes
        target_rows = max(min_rows, target_block_bytes // (lanes * itemsize))
        if rows <= min_rows:
            return lanes, rows, rows        # single full-extent block (exempt)
        block_rows = _pick_block_rows(rows, min_rows, target_rows)
        if block_rows is not None:
            return lanes, rows, block_rows
        if rows <= target_rows:
            return lanes, rows, rows        # full-extent single block, exact

    # Fallback: pad the flat buffer to a clean lane-dense tiling.
    lanes = 512 if total >= 8 * 512 else 128
    rows = -(-total // lanes)
    target_rows = max(min_rows, target_block_bytes // (lanes * itemsize))
    if rows <= target_rows and rows < _MIN_STEPS * min_rows:
        return lanes, rows, rows            # single full-extent block
    block_rows = max(min_rows, (min(target_rows, rows) // min_rows) * min_rows)
    if rows >= _MIN_STEPS * min_rows:
        cap = (rows // (_MIN_STEPS * min_rows)) * min_rows
        if cap >= min_rows:
            block_rows = min(block_rows, cap)
    padded_rows = -(-rows // block_rows) * block_rows
    return lanes, padded_rows, block_rows


# ----------------------------------------------------------------------------
# Pallas copy of a lane-dense 2-D buffer.
# ----------------------------------------------------------------------------
def _pallas_copy_2d(x2d, block_rows, vmem_limit_bytes, donate=False):
    rows, lanes = x2d.shape
    itemsize = jnp.dtype(x2d.dtype).itemsize
    extra = {"input_output_aliases": {0: 0}} if donate else {}
    return pl.pallas_call(
        _copy_kernel,
        out_shape=jax.ShapeDtypeStruct((rows, lanes), x2d.dtype),
        grid=(rows // block_rows,),
        in_specs=[pl.BlockSpec((block_rows, lanes), lambda i: (i, 0))],
        out_specs=pl.BlockSpec((block_rows, lanes), lambda i: (i, 0)),
        compiler_params=pltpu.CompilerParams(
            # Splits the 1-D grid across v7x's two TensorCores; no-op on 1-TC chips.
            dimension_semantics=("parallel",),
            vmem_limit_bytes=vmem_limit_bytes),
        cost_estimate=pl.CostEstimate(
            flops=0, transcendentals=0,
            bytes_accessed=2 * rows * lanes * itemsize),
        **extra,
    )(x2d)


# ----------------------------------------------------------------------------
# Module wrapper.
# ----------------------------------------------------------------------------
class ViewPallas:
    """JAX/Pallas equivalent of the PyTorch View(nn.Module).

    materialize=False (default) -> metadata-only reshape: exactly what
                                   x.view(*shape) is on a contiguous buffer.
    materialize=True            -> force a fresh buffer via the tiled,
                                   double-buffered Pallas copy kernel.
    donate=True                 -> alias input->output in the copy kernel
                                   (caller promises not to reuse x).
    """

    def __init__(self, shape, materialize=False, donate=False):
        self.shape = tuple(shape)
        self.materialize = materialize
        self.donate = donate

    def __call__(self, x):
        total = math.prod(x.shape)
        out_shape = _resolve_shape(total, self.shape)

        if not self.materialize or total == 0:
            # A view never needs HBM traffic on a contiguous buffer.
            return jnp.reshape(x, out_shape)

        itemsize = jnp.dtype(x.dtype).itemsize
        budget = _vmem_budget_bytes()
        target_block = budget // 6              # 2 arrays x 2 buffers + margin
        lanes, padded_rows, block_rows = _plan(total, itemsize, target_block)

        flat = jnp.reshape(x, (total,))         # metadata-only flatten
        padded_total = padded_rows * lanes
        if padded_total != total:
            flat = jnp.pad(flat, (0, padded_total - total))
        x2d = jnp.reshape(flat, (padded_rows, lanes))

        block_bytes = block_rows * lanes * itemsize
        vmem_limit = min(4 * block_bytes + 8 * _MIB, budget)
        donate_ok = self.donate and padded_total == total

        copied = _pallas_copy_2d(x2d, block_rows, vmem_limit, donate=donate_ok)

        flat_out = jnp.reshape(copied, (padded_total,))
        if padded_total != total:
            flat_out = flat_out[:total]
        return jnp.reshape(flat_out, out_shape)  # metadata-only un-flatten


if __name__ == "__main__":
    key = jax.random.PRNGKey(0)
    k1, k2, k3 = jax.random.split(key, 3)

    # Case 1: module-sized input, default path -> metadata-only reshape.
    x = jax.random.normal(k1, (2, 4, 16, 16), dtype=jnp.float32)
    y = jax.block_until_ready(ViewPallas((2, -1))(x))
    ref = jnp.reshape(x, (2, 4 * 16 * 16))
    assert y.shape == (2, 1024) and y.dtype == x.dtype
    assert bool(jnp.array_equal(y, ref))

    # Case 2: same input, explicitly materialized -> Pallas copy with a single
    # lane-dense (1, 2048) full-extent block.
    y2 = jax.block_until_ready(ViewPallas((2, -1), materialize=True)(x))
    assert y2.shape == (2, 1024) and y2.dtype == x.dtype
    assert bool(jnp.array_equal(y2, ref))

    # Case 3: larger (4 MiB) materialized copy -> lanes=16384, rows=64,
    # block_rows=8 => grid=(8,), even steps, double-buffered, "parallel".
    xb = jax.random.normal(k2, (16, 64, 32, 32), dtype=jnp.float32)
    yb = jax.block_until_ready(ViewPallas((16, -1), materialize=True)(xb))
    refb = jnp.reshape(xb, (16, 64 * 32 * 32))
    assert yb.shape == refb.shape and yb.dtype == xb.dtype
    assert bool(jnp.array_equal(yb, refb))

    # Case 4: bf16 exercises the dtype-aware (>=16 sublane) block rows.
    xh = jax.random.normal(k2, (16, 64, 32, 32), dtype=jnp.float32).astype(jnp.bfloat16)
    yh = jax.block_until_ready(ViewPallas((-1, 1024), materialize=True)(xh))
    refh = jnp.reshape(xh, (-1, 1024))
    assert yh.shape == refh.shape and yh.dtype == jnp.bfloat16
    assert bool(jnp.array_equal(yh, refh))

    # Case 5: awkward size (315 elements) -> padded lane-dense copy, so
    # materialize=True never silently returns an aliased view.
    xo = jax.random.normal(k3, (3, 5, 7, 3), dtype=jnp.float32)
    yo = jax.block_until_ready(ViewPallas((-1,), materialize=True)(xo))
    refo = jnp.reshape(xo, (-1,))
    assert yo.shape == (315,) and bool(jnp.array_equal(yo, refo))

    print("KERNEL_OK")
</pallas_src>

<mosaic_0001>
module attributes {stable_mosaic.version = 11 : i64} {
  func.func @_copy_kernel(%arg0: i32, %arg1: memref<1x2048xf32, #tpu.memory_space<vmem>>, %arg2: memref<1x2048xf32, #tpu.memory_space<vmem>>) attributes {dimension_semantics = [#tpu.dimension_semantics<parallel>], iteration_bounds = array<i64: 1>, scalar_prefetch = 0 : i64, scratch_operands = 0 : i64, tpu.core_type = #tpu.core_type<tc>, window_params = [{transform_indices = @transform_0, window_bounds = array<i64: 1, 2048>}, {transform_indices = @transform_1, window_bounds = array<i64: 1, 2048>}]} {
    %c0 = arith.constant 0 : index
    %c0_0 = arith.constant 0 : index
    %0 = vector.load %arg1[%c0, %c0_0] : memref<1x2048xf32, #tpu.memory_space<vmem>>, vector<1x2048xf32>
    %c0_1 = arith.constant 0 : index
    %c0_2 = arith.constant 0 : index
    %1 = vector.load %arg2[%c0_1, %c0_2] : memref<1x2048xf32, #tpu.memory_space<vmem>>, vector<1x2048xf32>
    tpu.vector_store %arg2[%c0_1, %c0_2], %0 {strides = array<i32>} : memref<1x2048xf32, #tpu.memory_space<vmem>>, vector<1x2048xf32>,
    return
  }
  func.func @transform_0(%arg0: i32) -> (i32, i32) {
    %c0_i32 = arith.constant 0 : i32
    %c0_i32_0 = arith.constant 0 : i32
    return %arg0, %c0_i32 : i32, i32
  }
  func.func @transform_1(%arg0: i32) -> (i32, i32) {
    %c0_i32 = arith.constant 0 : i32
    %c0_i32_0 = arith.constant 0 : i32
    return %arg0, %c0_i32 : i32, i32
  }
}

</mosaic_0001>

<llo_original>
// kernel: tpu_custom_call.1
$region0: #{tpu_custom_call.1}
  #allocation0 [shape = 'u32[]', space=smem, size = 0x4, offset = 0x4, fixed_abs, tag = 'smem constant byte address 0x4 - core index']
  #allocation1 [shape = 'u32[144,128]{1,0:T(1,128)}', space=vmem, size = 0x12000, scoped, tag = 'internal scratch']
  %s0 = inlined_call_operand.hbm [shape: f32[1,2048], index: 0, kind: input, shape index: {}]
  %s1 = inlined_call_operand.hbm [shape: f32[1,2048], index: 1, kind: output, shape index: {}]
  %s2 = sld [smem:[#allocation0]]
  $region18: #{tpu_custom_call.1} parent=0
    _
  %s4 = ssub.s32 1, %s2
  %s5 = scalar_select 0, %s4, %s2
  $region1: #{tpu_custom_call.1} parent=0
    #allocation2 [shape = 'u8[8192]{0}', space=vmem, size = 0x2000, scoped, tag = 'input window, operand 0, single buffered']
    #allocation3 [shape = 's32[1]{0}', space=sflag, size = 0x4, scoped, tag = 'scoped memory for tpu_custom_call.1']
    #allocation4 [shape = 's32[1]{0}', space=sflag, size = 0x4, scoped, tag = 'scoped memory for tpu_custom_call.1']
    #allocation5 [shape = 'u8[8192]{0}', space=vmem, size = 0x2000, scoped, tag = 'output window, operand 0, single buffered']
    %6 = vsyncpa [#allocation3], 0
    %7 = vsyncpa [#allocation4], 0
    // Predicated region
    $region2: #{tpu_custom_call.1} parent=1 // pred_check
      _
    $region3: #{tpu_custom_call.1} parent=1 // pred_check_branch
      %9 = sbr.rel (0) target = $region5
    $region4: #{tpu_custom_call.1} parent=1 // pred_region
      %s11 = ssub.s32 256, 256
      %12 = vsyncadd [#allocation3], %s11
      %s14 = sshll.u32 [#allocation2], 4
      %s15 = int_to_ptr.vmem [resolvable:$true] %s14
      %17 = dma.hbm_to_vmem [thread:$0]  %s0, 256, %s15, [#allocation3]
    $region5: #{tpu_custom_call.1} parent=1 // pred_fallthru
      _
    // Predicated region
    $region6: #{tpu_custom_call.1} parent=1 // pred_check
      _
    $region7: #{tpu_custom_call.1} parent=1 // pred_check_branch
      %19 = sbr.rel (0) target = $region9
    $region8: #{tpu_custom_call.1} parent=1 // pred_region
      %20 = dma.done [#allocation3], 256
    $region9: #{tpu_custom_call.1} parent=1 // pred_fallthru
      _
    %v21 = vld [vmem:[#allocation2] sm:$0xff]
    %v22 = vld [vmem:[#allocation2 + $0x8] sm:$0xff]
    %23 = vst [vmem:[#allocation5] sm:$0xff] %v21
    %24 = vst [vmem:[#allocation5 + $0x8] sm:$0xff] %v22
    // Predicated region
    $region10: #{tpu_custom_call.1} parent=1 // pred_check
      _
    $region11: #{tpu_custom_call.1} parent=1 // pred_check_branch
      %26 = sbr.rel (0) target = $region13
    $region12: #{tpu_custom_call.1} parent=1 // pred_region
      %s28 = ssub.s32 256, 256
      %29 = vsyncadd [#allocation4], %s28
      %s31 = sshll.u32 [#allocation5], 4
      %s32 = int_to_ptr.vmem [resolvable:$true] %s31
      %34 = dma.vmem_to_hbm [thread:$0]  %s32, 256, %s1, [#allocation4]
    $region13: #{tpu_custom_call.1} parent=1 // pred_fallthru
      _
    // Predicated region
    $region14: #{tpu_custom_call.1} parent=1 // pred_check
      _
    $region15: #{tpu_custom_call.1} parent=1 // pred_check_branch
      %36 = sbr.rel (0) target = $region17
    $region16: #{tpu_custom_call.1} parent=1 // pred_region
      %37 = dma.done [#allocation4], 256
    $region17: #{tpu_custom_call.1} parent=1 // pred_fallthru
      _
    %38 = vsyncpa [#allocation3], 1
    %39 = vsyncpa [#allocation4], 1

</llo_original>
